<compile_context>
chip_gen: v7x
topology: tpu7x:2x2x1
jax: 0.10.0
libtpu: 0.0.40
codegen_flags: <defaults>
</compile_context>

<pallas_src>
import functools

import jax
import jax.numpy as jnp
from jax.experimental import pallas as pl
from jax.experimental.pallas import tpu as pltpu

HIGHEST = jax.lax.Precision.HIGHEST


def _structural_attention_kernel(feat_all_ref, feat_dst_ref, wcat_ref,
                                 acat_ref, adjw_ref, out_ref, *, n_heads):
    H = n_heads
    HC = out_ref.shape[-1]
    C = HC // H

    # ---- projections: heads batched, lin||res fused into one MXU pass ------
    feat_all = feat_all_ref[...].astype(jnp.bfloat16)          # [N, F]
    feat_dst = feat_dst_ref[...].astype(jnp.bfloat16)          # [TD, F]
    w_cat = wcat_ref[...].astype(jnp.bfloat16)                 # [F, 2*HC] (lin||res)

    # source-side projection (needed for alpha_l and aggregation): [N, HC]
    x_src = jnp.dot(feat_all, w_cat[:, :HC],
                    preferred_element_type=jnp.float32)
    # dst-side projection + residual projection in a single matmul: [TD, 2*HC]
    xr_dst = jnp.dot(feat_dst, w_cat, preferred_element_type=jnp.float32)
    x_dst = xr_dst[:, :HC]
    res_dst = xr_dst[:, HC:]

    # ---- attention logits for all heads with one dot per side --------------
    a_cat = acat_ref[...].astype(jnp.bfloat16)                 # [2H, HC] (AL||AR rows)
    # alpha_l laid out as per-head rows over sources: [H, N]
    alpha_l = jax.lax.dot_general(
        a_cat[:H, :], x_src.astype(jnp.bfloat16),
        dimension_numbers=(((1,), (1,)), ((), ())),
        preferred_element_type=jnp.float32)
    # alpha_r laid out as per-destination columns: [TD, H]
    alpha_r = jax.lax.dot_general(
        x_dst.astype(jnp.bfloat16), a_cat[H:, :],
        dimension_numbers=(((1,), (1,)), ((), ())),
        preferred_element_type=jnp.float32)

    # ---- masked per-destination softmax + aggregation ----------------------
    adj_w = adjw_ref[...]                                      # [TD, N] (dst, src)
    # Mask derived from the weights (0.0 == no edge; edge weights are non-zero).
    edge = adj_w != 0.0
    neg_big = jnp.float32(-1e30)

    aggs = []
    for h in range(H):                                         # H is small: unrolled
        # score[dst, src] = leaky_relu(edge_w * (alpha_l[src] + alpha_r[dst]))
        s = adj_w * (alpha_r[:, h:h + 1] + alpha_l[h:h + 1, :])    # [TD, N]
        s = jnp.where(s >= 0.0, s, 0.2 * s)                        # LeakyReLU(0.2)
        s = jnp.where(edge, s, neg_big)
        m = jnp.max(s, axis=-1, keepdims=True)
        e = jnp.where(edge, jnp.exp(s - m), 0.0)
        d = jnp.sum(e, axis=-1, keepdims=True)
        d = jnp.where(d > 0.0, d, 1.0)         # isolated dst -> zero aggregation
        coeff = e * pl.reciprocal(d, approx=True)                  # EUP, not VALU div
        agg = jnp.dot(coeff.astype(jnp.bfloat16),
                      x_src[:, h * C:(h + 1) * C].astype(jnp.bfloat16),
                      preferred_element_type=jnp.float32)          # [TD, C]
        aggs.append(agg)
    agg = jnp.concatenate(aggs, axis=-1)                           # [TD, HC]

    # ELU(alpha=1), residual added after the activation (residual=True).
    act = jnp.where(agg > 0.0, agg, jnp.exp(jnp.minimum(agg, 0.0)) - 1.0)
    out_ref[...] = act + res_dst

    # TODO(synk): attn_drop / ffd_drop are training-only (eval mode -> identity).
    # TODO(synk): for very large N, also tile the src axis (online masked softmax
    # with VMEM scratch), hoist the x_src projection to its own pass, and use
    # scalar-prefetched block lists to skip all-zero adjacency tiles.


def structural_attention_layer(feat, w_lin, w_res, att_l, att_r, adj_w):
    """feat: [N, F]; w_lin/w_res: [H, F, C]; att_l/att_r: [H, C];
    adj_w: [N, N] dense (dst, src), 0.0 where no edge.  Returns [N, H*C]."""
    N, F = feat.shape
    H, _, C = w_lin.shape
    HC = H * C

    # lin || residual projection weights fused into one matrix: [F, 2*HC],
    # column order h*C+c matches torch's .view(-1, H, C).reshape(-1, H*C).
    w_cat = jnp.concatenate(
        [jnp.transpose(w_lin, (1, 0, 2)).reshape(F, HC),
         jnp.transpose(w_res, (1, 0, 2)).reshape(F, HC)], axis=-1)

    # AL/AR block-diagonal matrices mapping flattened head features ->
    # per-head logits: [2H, HC]
    cols = jnp.arange(HC)
    rows = cols // C
    a_l = jnp.zeros((H, HC), jnp.float32).at[rows, cols].set(att_l.reshape(HC))
    a_r = jnp.zeros((H, HC), jnp.float32).at[rows, cols].set(att_r.reshape(HC))
    a_cat = jnp.concatenate([a_l, a_r], axis=0)

    # destination-node tiling (one tile for small graphs).
    TD = N if N <= 128 else 128
    assert N % TD == 0, "TODO(synk): pad N to a multiple of the dst tile"
    grid = (N // TD,)

    kernel = functools.partial(_structural_attention_kernel, n_heads=H)
    return pl.pallas_call(
        kernel,
        out_shape=jax.ShapeDtypeStruct((N, HC), jnp.float32),
        grid_spec=pltpu.PrefetchScalarGridSpec(
            num_scalar_prefetch=0,
            grid=grid,
            in_specs=[
                pl.BlockSpec((N, F), lambda i: (0, 0)),        # feat (all nodes)
                pl.BlockSpec((TD, F), lambda i: (i, 0)),       # feat (dst tile)
                pl.BlockSpec((F, 2 * HC), lambda i: (0, 0)),   # lin || res weights
                pl.BlockSpec((2 * H, HC), lambda i: (0, 0)),   # att_l || att_r
                pl.BlockSpec((TD, N), lambda i: (i, 0)),       # adjacency (dst rows)
            ],
            out_specs=pl.BlockSpec((TD, HC), lambda i: (i, 0)),
        ),
        compiler_params=pltpu.CompilerParams(
            dimension_semantics=("parallel",)),
    )(feat, feat, w_cat, a_cat, adj_w)


def reference_edge_list(feat, w_lin, w_res, att_l, att_r, edge_index,
                        edge_weight, num_nodes):
    """Pure-JAX edge-list reference mirroring the PyTorch forward (eval mode)."""
    H, F, C = w_lin.shape
    x = jnp.einsum('nf,hfc->nhc', feat, w_lin, precision=HIGHEST)   # [N, H, C]
    al = jnp.sum(x * att_l.reshape(1, H, C), axis=-1)               # [N, H]
    ar = jnp.sum(x * att_r.reshape(1, H, C), axis=-1)               # [N, H]
    src, dst = edge_index[0], edge_index[1]
    alpha = al[src] + ar[dst]                                       # [E, H]
    alpha = edge_weight[:, None] * alpha
    alpha = jnp.where(alpha >= 0.0, alpha, 0.2 * alpha)
    seg_max = jax.ops.segment_max(alpha, dst, num_segments=num_nodes)
    e = jnp.exp(alpha - seg_max[dst])
    seg_sum = jax.ops.segment_sum(e, dst, num_segments=num_nodes)
    coeff = e / seg_sum[dst]
    out = jax.ops.segment_sum(x[src] * coeff[:, :, None], dst,
                              num_segments=num_nodes)               # [N, H, C]
    out = jnp.where(out > 0.0, out, jnp.exp(jnp.minimum(out, 0.0)) - 1.0)
    out = out.reshape(num_nodes, H * C)
    out = out + jnp.einsum('nf,hfc->nhc', feat, w_res,
                           precision=HIGHEST).reshape(num_nodes, H * C)
    return out


if __name__ == "__main__":
    # Small shapes consistent with the module.
    N = 16            # number of nodes
    F = 16            # input_dim
    OUT = 32          # output_dim
    H = 4             # n_heads
    C = OUT // H      # out_dim per head = 8

    key = jax.random.PRNGKey(0)
    k_feat, k_wl, k_wr, k_al, k_ar, k_ew = jax.random.split(key, 6)

    feat = jax.random.normal(k_feat, (N, F), dtype=jnp.float32)

    # Deterministic parameter init (shapes from __init__; uniform like torch).
    stdv_lin = 1.0 / jnp.sqrt(jnp.float32(F))
    w_lin = jax.random.uniform(k_wl, (H, F, C), jnp.float32, -stdv_lin, stdv_lin)
    w_res = jax.random.uniform(k_wr, (H, F, C), jnp.float32, -stdv_lin, stdv_lin)
    stdv_att = 1.0 / jnp.sqrt(jnp.float32(H))
    att_l = jax.random.uniform(k_al, (H, C), jnp.float32, -stdv_att, stdv_att)
    att_r = jax.random.uniform(k_ar, (H, C), jnp.float32, -stdv_att, stdv_att)

    # Deterministic edge list: self loops + ring(+1) + ring(+3)  (all unique).
    idx = jnp.arange(N, dtype=jnp.int32)
    src = jnp.concatenate([idx, idx, idx])
    dst = jnp.concatenate([idx, (idx + 1) % N, (idx + 3) % N])
    edge_index = jnp.stack([src, dst], axis=0)                      # [2, E]
    E = edge_index.shape[1]
    edge_weight = 0.5 + jax.random.uniform(k_ew, (E,), jnp.float32)  # strictly > 0

    # Densify the edge list for the kernel (adj[dst, src]); 0.0 marks "no edge".
    adj_w = jnp.zeros((N, N), jnp.float32).at[dst, src].set(edge_weight)

    out = structural_attention_layer(feat, w_lin, w_res, att_l, att_r, adj_w)
    out = jax.block_until_ready(out)

    ref = reference_edge_list(feat, w_lin, w_res, att_l, att_r,
                              edge_index, edge_weight, N)
    assert out.shape == (N, H * C)
    # Tolerance loosened vs the f32 reference because the kernel uses bf16
    # matmul operands with f32 accumulation and an approx reciprocal.
    assert jnp.allclose(out, ref, atol=3e-2, rtol=3e-2), "mismatch vs reference"

    print("KERNEL_OK")
</pallas_src>

<mosaic_0001>
module attributes {stable_mosaic.version = 11 : i64} {
  func.func @_structural_attention_kernel(%arg0: i32, %arg1: memref<16x16xf32, #tpu.memory_space<vmem>>, %arg2: memref<16x16xf32, #tpu.memory_space<vmem>>, %arg3: memref<16x64xf32, #tpu.memory_space<vmem>>, %arg4: memref<8x32xf32, #tpu.memory_space<vmem>>, %arg5: memref<16x16xf32, #tpu.memory_space<vmem>>, %arg6: memref<16x32xf32, #tpu.memory_space<vmem>>) attributes {dimension_semantics = [#tpu.dimension_semantics<parallel>], iteration_bounds = array<i64: 1>, scalar_prefetch = 0 : i64, scratch_operands = 0 : i64, tpu.core_type = #tpu.core_type<tc>, window_params = [{pipeline_mode = #tpu.pipeline_mode<synchronous>, transform_indices = @transform_0, window_bounds = array<i64: 16, 16>}, {transform_indices = @transform_1, window_bounds = array<i64: 16, 16>}, {pipeline_mode = #tpu.pipeline_mode<synchronous>, transform_indices = @transform_2, window_bounds = array<i64: 16, 64>}, {pipeline_mode = #tpu.pipeline_mode<synchronous>, transform_indices = @transform_3, window_bounds = array<i64: 8, 32>}, {transform_indices = @transform_4, window_bounds = array<i64: 16, 16>}, {transform_indices = @transform_5, window_bounds = array<i64: 16, 32>}]} {
    %c0 = arith.constant 0 : index
    %c0_0 = arith.constant 0 : index
    %0 = vector.load %arg1[%c0, %c0_0] : memref<16x16xf32, #tpu.memory_space<vmem>>, vector<16x16xf32>
    %1 = arith.truncf %0 : vector<16x16xf32> to vector<16x16xbf16>
    %c0_1 = arith.constant 0 : index
    %c0_2 = arith.constant 0 : index
    %2 = vector.load %arg2[%c0_1, %c0_2] : memref<16x16xf32, #tpu.memory_space<vmem>>, vector<16x16xf32>
    %3 = arith.truncf %2 : vector<16x16xf32> to vector<16x16xbf16>
    %c0_3 = arith.constant 0 : index
    %c0_4 = arith.constant 0 : index
    %4 = vector.load %arg3[%c0_3, %c0_4] : memref<16x64xf32, #tpu.memory_space<vmem>>, vector<16x64xf32>
    %5 = arith.truncf %4 : vector<16x64xf32> to vector<16x64xbf16>
    %6 = vector.extract_strided_slice %5 {offsets = [0, 0], sizes = [16, 32], strides = [1, 1]} : vector<16x64xbf16> to vector<16x32xbf16>
    %cst = arith.constant dense<0.000000e+00> : vector<16x32xf32>
    %7 = tpu.matmul %1, %6, %cst {dimension_numbers = #tpu.dot_dimension_numbers<[1], [0], [0], [1], [0, 0, 1, 1], [], []>} : vector<16x16xbf16>, vector<16x32xbf16>, vector<16x32xf32> -> vector<16x32xf32>
    %cst_5 = arith.constant dense<0.000000e+00> : vector<16x64xf32>
    %8 = tpu.matmul %3, %5, %cst_5 {dimension_numbers = #tpu.dot_dimension_numbers<[1], [0], [0], [1], [0, 0, 1, 1], [], []>} : vector<16x16xbf16>, vector<16x64xbf16>, vector<16x64xf32> -> vector<16x64xf32>
    %9 = vector.extract_strided_slice %8 {offsets = [0, 0], sizes = [16, 32], strides = [1, 1]} : vector<16x64xf32> to vector<16x32xf32>
    %10 = vector.extract_strided_slice %8 {offsets = [0, 32], sizes = [16, 32], strides = [1, 1]} : vector<16x64xf32> to vector<16x32xf32>
    %c0_6 = arith.constant 0 : index
    %c0_7 = arith.constant 0 : index
    %11 = vector.load %arg4[%c0_6, %c0_7] : memref<8x32xf32, #tpu.memory_space<vmem>>, vector<8x32xf32>
    %12 = arith.truncf %11 : vector<8x32xf32> to vector<8x32xbf16>
    %13 = vector.extract_strided_slice %12 {offsets = [0, 0], sizes = [4, 32], strides = [1, 1]} : vector<8x32xbf16> to vector<4x32xbf16>
    %14 = arith.truncf %7 : vector<16x32xf32> to vector<16x32xbf16>
    %cst_8 = arith.constant dense<0.000000e+00> : vector<4x16xf32>
    %15 = tpu.matmul %13, %14, %cst_8 {dimension_numbers = #tpu.dot_dimension_numbers<[1], [1], [0], [0], [0, 0, 1, 0], [], []>} : vector<4x32xbf16>, vector<16x32xbf16>, vector<4x16xf32> -> vector<4x16xf32>
    %16 = arith.truncf %9 : vector<16x32xf32> to vector<16x32xbf16>
    %17 = vector.extract_strided_slice %12 {offsets = [4, 0], sizes = [4, 32], strides = [1, 1]} : vector<8x32xbf16> to vector<4x32xbf16>
    %cst_9 = arith.constant dense<0.000000e+00> : vector<16x4xf32>
    %18 = tpu.matmul %16, %17, %cst_9 {dimension_numbers = #tpu.dot_dimension_numbers<[1], [1], [0], [0], [0, 0, 1, 0], [], []>} : vector<16x32xbf16>, vector<4x32xbf16>, vector<16x4xf32> -> vector<16x4xf32>
    %c0_10 = arith.constant 0 : index
    %c0_11 = arith.constant 0 : index
    %19 = vector.load %arg5[%c0_10, %c0_11] : memref<16x16xf32, #tpu.memory_space<vmem>>, vector<16x16xf32>
    %cst_12 = arith.constant 0.000000e+00 : f32
    %20 = vector.broadcast %cst_12 : f32 to vector<16x16xf32>
    %21 = arith.cmpf one, %19, %20 : vector<16x16xf32>
    %22 = vector.extract_strided_slice %18 {offsets = [0, 0], sizes = [16, 1], strides = [1, 1]} : vector<16x4xf32> to vector<16x1xf32>
    %23 = vector.extract_strided_slice %15 {offsets = [0, 0], sizes = [1, 16], strides = [1, 1]} : vector<4x16xf32> to vector<1x16xf32>
    %24 = vector.broadcast %22 : vector<16x1xf32> to vector<16x16xf32>
    %25 = vector.broadcast %23 : vector<1x16xf32> to vector<16x16xf32>
    %26 = arith.addf %24, %25 : vector<16x16xf32>
    %27 = arith.mulf %19, %26 : vector<16x16xf32>
    %cst_13 = arith.constant 0.000000e+00 : f32
    %28 = vector.broadcast %cst_13 : f32 to vector<16x16xf32>
    %29 = arith.cmpf oge, %27, %28 : vector<16x16xf32>
    %cst_14 = arith.constant 2.000000e-01 : f32
    %30 = vector.broadcast %cst_14 : f32 to vector<16x16xf32>
    %31 = arith.mulf %30, %27 : vector<16x16xf32>
    %32 = arith.select %29, %27, %31 : vector<16x16xi1>, vector<16x16xf32>
    %cst_15 = arith.constant -1.000000e+30 : f32
    %33 = vector.broadcast %cst_15 : f32 to vector<16x16xf32>
    %34 = arith.select %21, %32, %33 : vector<16x16xi1>, vector<16x16xf32>
    %cst_16 = arith.constant dense<0xFF800000> : vector<16xf32>
    %35 = vector.multi_reduction <maximumf>, %34, %cst_16 [1] : vector<16x16xf32> to vector<16xf32>
    %36 = vector.shape_cast %35 : vector<16xf32> to vector<16x1xf32>
    %37 = vector.broadcast %36 : vector<16x1xf32> to vector<16x16xf32>
    %38 = arith.subf %34, %37 : vector<16x16xf32>
    %39 = math.exp %38 : vector<16x16xf32>
    %cst_17 = arith.constant 0.000000e+00 : f32
    %40 = vector.broadcast %cst_17 : f32 to vector<16x16xf32>
    %41 = arith.select %21, %39, %40 : vector<16x16xi1>, vector<16x16xf32>
    %cst_18 = arith.constant dense<0.000000e+00> : vector<16xf32>
    %42 = vector.multi_reduction <add>, %41, %cst_18 [1] : vector<16x16xf32> to vector<16xf32>
    %43 = vector.shape_cast %42 : vector<16xf32> to vector<16x1xf32>
    %cst_19 = arith.constant 0.000000e+00 : f32
    %44 = vector.broadcast %cst_19 : f32 to vector<16x1xf32>
    %45 = arith.cmpf ogt, %43, %44 : vector<16x1xf32>
    %cst_20 = arith.constant 1.000000e+00 : f32
    %46 = vector.broadcast %cst_20 : f32 to vector<16x1xf32>
    %47 = arith.select %45, %43, %46 : vector<16x1xi1>, vector<16x1xf32>
    %48 = tpu.reciprocal %47 {approx = true} : vector<16x1xf32> -> vector<16x1xf32>
    %49 = vector.broadcast %48 : vector<16x1xf32> to vector<16x16xf32>
    %50 = arith.mulf %41, %49 : vector<16x16xf32>
    %51 = arith.truncf %50 : vector<16x16xf32> to vector<16x16xbf16>
    %52 = vector.extract_strided_slice %7 {offsets = [0, 0], sizes = [16, 8], strides = [1, 1]} : vector<16x32xf32> to vector<16x8xf32>
    %53 = arith.truncf %52 : vector<16x8xf32> to vector<16x8xbf16>
    %cst_21 = arith.constant dense<0.000000e+00> : vector<16x8xf32>
    %54 = tpu.matmul %51, %53, %cst_21 {dimension_numbers = #tpu.dot_dimension_numbers<[1], [0], [0], [1], [0, 0, 1, 1], [], []>} : vector<16x16xbf16>, vector<16x8xbf16>, vector<16x8xf32> -> vector<16x8xf32>
    %55 = vector.extract_strided_slice %18 {offsets = [0, 1], sizes = [16, 1], strides = [1, 1]} : vector<16x4xf32> to vector<16x1xf32>
    %56 = vector.extract_strided_slice %15 {offsets = [1, 0], sizes = [1, 16], strides = [1, 1]} : vector<4x16xf32> to vector<1x16xf32>
    %57 = vector.broadcast %55 : vector<16x1xf32> to vector<16x16xf32>
    %58 = vector.broadcast %56 : vector<1x16xf32> to vector<16x16xf32>
    %59 = arith.addf %57, %58 : vector<16x16xf32>
    %60 = arith.mulf %19, %59 : vector<16x16xf32>
    %cst_22 = arith.constant 0.000000e+00 : f32
    %61 = vector.broadcast %cst_22 : f32 to vector<16x16xf32>
    %62 = arith.cmpf oge, %60, %61 : vector<16x16xf32>
    %cst_23 = arith.constant 2.000000e-01 : f32
    %63 = vector.broadcast %cst_23 : f32 to vector<16x16xf32>
    %64 = arith.mulf %63, %60 : vector<16x16xf32>
    %65 = arith.select %62, %60, %64 : vector<16x16xi1>, vector<16x16xf32>
    %cst_24 = arith.constant -1.000000e+30 : f32
    %66 = vector.broadcast %cst_24 : f32 to vector<16x16xf32>
    %67 = arith.select %21, %65, %66 : vector<16x16xi1>, vector<16x16xf32>
    %cst_25 = arith.constant dense<0xFF800000> : vector<16xf32>
    %68 = vector.multi_reduction <maximumf>, %67, %cst_25 [1] : vector<16x16xf32> to vector<16xf32>
    %69 = vector.shape_cast %68 : vector<16xf32> to vector<16x1xf32>
    %70 = vector.broadcast %69 : vector<16x1xf32> to vector<16x16xf32>
    %71 = arith.subf %67, %70 : vector<16x16xf32>
    %72 = math.exp %71 : vector<16x16xf32>
    %cst_26 = arith.constant 0.000000e+00 : f32
    %73 = vector.broadcast %cst_26 : f32 to vector<16x16xf32>
    %74 = arith.select %21, %72, %73 : vector<16x16xi1>, vector<16x16xf32>
    %cst_27 = arith.constant dense<0.000000e+00> : vector<16xf32>
    %75 = vector.multi_reduction <add>, %74, %cst_27 [1] : vector<16x16xf32> to vector<16xf32>
    %76 = vector.shape_cast %75 : vector<16xf32> to vector<16x1xf32>
    %cst_28 = arith.constant 0.000000e+00 : f32
    %77 = vector.broadcast %cst_28 : f32 to vector<16x1xf32>
    %78 = arith.cmpf ogt, %76, %77 : vector<16x1xf32>
    %cst_29 = arith.constant 1.000000e+00 : f32
    %79 = vector.broadcast %cst_29 : f32 to vector<16x1xf32>
    %80 = arith.select %78, %76, %79 : vector<16x1xi1>, vector<16x1xf32>
    %81 = tpu.reciprocal %80 {approx = true} : vector<16x1xf32> -> vector<16x1xf32>
    %82 = vector.broadcast %81 : vector<16x1xf32> to vector<16x16xf32>
    %83 = arith.mulf %74, %82 : vector<16x16xf32>
    %84 = arith.truncf %83 : vector<16x16xf32> to vector<16x16xbf16>
    %85 = vector.extract_strided_slice %7 {offsets = [0, 8], sizes = [16, 8], strides = [1, 1]} : vector<16x32xf32> to vector<16x8xf32>
    %86 = arith.truncf %85 : vector<16x8xf32> to vector<16x8xbf16>
    %cst_30 = arith.constant dense<0.000000e+00> : vector<16x8xf32>
    %87 = tpu.matmul %84, %86, %cst_30 {dimension_numbers = #tpu.dot_dimension_numbers<[1], [0], [0], [1], [0, 0, 1, 1], [], []>} : vector<16x16xbf16>, vector<16x8xbf16>, vector<16x8xf32> -> vector<16x8xf32>
    %88 = vector.extract_strided_slice %18 {offsets = [0, 2], sizes = [16, 1], strides = [1, 1]} : vector<16x4xf32> to vector<16x1xf32>
    %89 = vector.extract_strided_slice %15 {offsets = [2, 0], sizes = [1, 16], strides = [1, 1]} : vector<4x16xf32> to vector<1x16xf32>
    %90 = vector.broadcast %88 : vector<16x1xf32> to vector<16x16xf32>
    %91 = vector.broadcast %89 : vector<1x16xf32> to vector<16x16xf32>
    %92 = arith.addf %90, %91 : vector<16x16xf32>
    %93 = arith.mulf %19, %92 : vector<16x16xf32>
    %cst_31 = arith.constant 0.000000e+00 : f32
    %94 = vector.broadcast %cst_31 : f32 to vector<16x16xf32>
    %95 = arith.cmpf oge, %93, %94 : vector<16x16xf32>
    %cst_32 = arith.constant 2.000000e-01 : f32
    %96 = vector.broadcast %cst_32 : f32 to vector<16x16xf32>
    %97 = arith.mulf %96, %93 : vector<16x16xf32>
    %98 = arith.select %95, %93, %97 : vector<16x16xi1>, vector<16x16xf32>
    %cst_33 = arith.constant -1.000000e+30 : f32
    %99 = vector.broadcast %cst_33 : f32 to vector<16x16xf32>
    %100 = arith.select %21, %98, %99 : vector<16x16xi1>, vector<16x16xf32>
    %cst_34 = arith.constant dense<0xFF800000> : vector<16xf32>
    %101 = vector.multi_reduction <maximumf>, %100, %cst_34 [1] : vector<16x16xf32> to vector<16xf32>
    %102 = vector.shape_cast %101 : vector<16xf32> to vector<16x1xf32>
    %103 = vector.broadcast %102 : vector<16x1xf32> to vector<16x16xf32>
    %104 = arith.subf %100, %103 : vector<16x16xf32>
    %105 = math.exp %104 : vector<16x16xf32>
    %cst_35 = arith.constant 0.000000e+00 : f32
    %106 = vector.broadcast %cst_35 : f32 to vector<16x16xf32>
    %107 = arith.select %21, %105, %106 : vector<16x16xi1>, vector<16x16xf32>
    %cst_36 = arith.constant dense<0.000000e+00> : vector<16xf32>
    %108 = vector.multi_reduction <add>, %107, %cst_36 [1] : vector<16x16xf32> to vector<16xf32>
    %109 = vector.shape_cast %108 : vector<16xf32> to vector<16x1xf32>
    %cst_37 = arith.constant 0.000000e+00 : f32
    %110 = vector.broadcast %cst_37 : f32 to vector<16x1xf32>
    %111 = arith.cmpf ogt, %109, %110 : vector<16x1xf32>
    %cst_38 = arith.constant 1.000000e+00 : f32
    %112 = vector.broadcast %cst_38 : f32 to vector<16x1xf32>
    %113 = arith.select %111, %109, %112 : vector<16x1xi1>, vector<16x1xf32>
    %114 = tpu.reciprocal %113 {approx = true} : vector<16x1xf32> -> vector<16x1xf32>
    %115 = vector.broadcast %114 : vector<16x1xf32> to vector<16x16xf32>
    %116 = arith.mulf %107, %115 : vector<16x16xf32>
    %117 = arith.truncf %116 : vector<16x16xf32> to vector<16x16xbf16>
    %118 = vector.extract_strided_slice %7 {offsets = [0, 16], sizes = [16, 8], strides = [1, 1]} : vector<16x32xf32> to vector<16x8xf32>
    %119 = arith.truncf %118 : vector<16x8xf32> to vector<16x8xbf16>
    %cst_39 = arith.constant dense<0.000000e+00> : vector<16x8xf32>
    %120 = tpu.matmul %117, %119, %cst_39 {dimension_numbers = #tpu.dot_dimension_numbers<[1], [0], [0], [1], [0, 0, 1, 1], [], []>} : vector<16x16xbf16>, vector<16x8xbf16>, vector<16x8xf32> -> vector<16x8xf32>
    %121 = vector.extract_strided_slice %18 {offsets = [0, 3], sizes = [16, 1], strides = [1, 1]} : vector<16x4xf32> to vector<16x1xf32>
    %122 = vector.extract_strided_slice %15 {offsets = [3, 0], sizes = [1, 16], strides = [1, 1]} : vector<4x16xf32> to vector<1x16xf32>
    %123 = vector.broadcast %121 : vector<16x1xf32> to vector<16x16xf32>
    %124 = vector.broadcast %122 : vector<1x16xf32> to vector<16x16xf32>
    %125 = arith.addf %123, %124 : vector<16x16xf32>
    %126 = arith.mulf %19, %125 : vector<16x16xf32>
    %cst_40 = arith.constant 0.000000e+00 : f32
    %127 = vector.broadcast %cst_40 : f32 to vector<16x16xf32>
    %128 = arith.cmpf oge, %126, %127 : vector<16x16xf32>
    %cst_41 = arith.constant 2.000000e-01 : f32
    %129 = vector.broadcast %cst_41 : f32 to vector<16x16xf32>
    %130 = arith.mulf %129, %126 : vector<16x16xf32>
    %131 = arith.select %128, %126, %130 : vector<16x16xi1>, vector<16x16xf32>
    %cst_42 = arith.constant -1.000000e+30 : f32
    %132 = vector.broadcast %cst_42 : f32 to vector<16x16xf32>
    %133 = arith.select %21, %131, %132 : vector<16x16xi1>, vector<16x16xf32>
    %cst_43 = arith.constant dense<0xFF800000> : vector<16xf32>
    %134 = vector.multi_reduction <maximumf>, %133, %cst_43 [1] : vector<16x16xf32> to vector<16xf32>
    %135 = vector.shape_cast %134 : vector<16xf32> to vector<16x1xf32>
    %136 = vector.broadcast %135 : vector<16x1xf32> to vector<16x16xf32>
    %137 = arith.subf %133, %136 : vector<16x16xf32>
    %138 = math.exp %137 : vector<16x16xf32>
    %cst_44 = arith.constant 0.000000e+00 : f32
    %139 = vector.broadcast %cst_44 : f32 to vector<16x16xf32>
    %140 = arith.select %21, %138, %139 : vector<16x16xi1>, vector<16x16xf32>
    %cst_45 = arith.constant dense<0.000000e+00> : vector<16xf32>
    %141 = vector.multi_reduction <add>, %140, %cst_45 [1] : vector<16x16xf32> to vector<16xf32>
    %142 = vector.shape_cast %141 : vector<16xf32> to vector<16x1xf32>
    %cst_46 = arith.constant 0.000000e+00 : f32
    %143 = vector.broadcast %cst_46 : f32 to vector<16x1xf32>
    %144 = arith.cmpf ogt, %142, %143 : vector<16x1xf32>
    %cst_47 = arith.constant 1.000000e+00 : f32
    %145 = vector.broadcast %cst_47 : f32 to vector<16x1xf32>
    %146 = arith.select %144, %142, %145 : vector<16x1xi1>, vector<16x1xf32>
    %147 = tpu.reciprocal %146 {approx = true} : vector<16x1xf32> -> vector<16x1xf32>
    %148 = vector.broadcast %147 : vector<16x1xf32> to vector<16x16xf32>
    %149 = arith.mulf %140, %148 : vector<16x16xf32>
    %150 = arith.truncf %149 : vector<16x16xf32> to vector<16x16xbf16>
    %151 = vector.extract_strided_slice %7 {offsets = [0, 24], sizes = [16, 8], strides = [1, 1]} : vector<16x32xf32> to vector<16x8xf32>
    %152 = arith.truncf %151 : vector<16x8xf32> to vector<16x8xbf16>
    %cst_48 = arith.constant dense<0.000000e+00> : vector<16x8xf32>
    %153 = tpu.matmul %150, %152, %cst_48 {dimension_numbers = #tpu.dot_dimension_numbers<[1], [0], [0], [1], [0, 0, 1, 1], [], []>} : vector<16x16xbf16>, vector<16x8xbf16>, vector<16x8xf32> -> vector<16x8xf32>
    %154 = tpu.concatenate %54, %87, %120, %153 in 1 : vector<16x8xf32>, vector<16x8xf32>, vector<16x8xf32>, vector<16x8xf32> -> vector<16x32xf32>
    %cst_49 = arith.constant 0.000000e+00 : f32
    %155 = vector.broadcast %cst_49 : f32 to vector<16x32xf32>
    %156 = arith.cmpf ogt, %154, %155 : vector<16x32xf32>
    %cst_50 = arith.constant 0.000000e+00 : f32
    %157 = vector.broadcast %cst_50 : f32 to vector<16x32xf32>
    %158 = arith.minimumf %154, %157 : vector<16x32xf32>
    %159 = math.exp %158 : vector<16x32xf32>
    %cst_51 = arith.constant 1.000000e+00 : f32
    %160 = vector.broadcast %cst_51 : f32 to vector<16x32xf32>
    %161 = arith.subf %159, %160 : vector<16x32xf32>
    %162 = arith.select %156, %154, %161 : vector<16x32xi1>, vector<16x32xf32>
    %163 = arith.addf %162, %10 : vector<16x32xf32>
    %c0_52 = arith.constant 0 : index
    %c0_53 = arith.constant 0 : index
    %164 = vector.load %arg6[%c0_52, %c0_53] : memref<16x32xf32, #tpu.memory_space<vmem>>, vector<16x32xf32>
    tpu.vector_store %arg6[%c0_52, %c0_53], %163 {strides = array<i32>} : memref<16x32xf32, #tpu.memory_space<vmem>>, vector<16x32xf32>,
    return
  }
  func.func @transform_0(%arg0: i32) -> (i32, i32) {
    %c0_i32 = arith.constant 0 : i32
    %c0_i32_0 = arith.constant 0 : i32
    %c0_i32_1 = arith.constant 0 : i32
    return %c0_i32, %c0_i32_0 : i32, i32
  }
  func.func @transform_1(%arg0: i32) -> (i32, i32) {
    %c0_i32 = arith.constant 0 : i32
    %c0_i32_0 = arith.constant 0 : i32
    return %arg0, %c0_i32 : i32, i32
  }
  func.func @transform_2(%arg0: i32) -> (i32, i32) {
    %c0_i32 = arith.constant 0 : i32
    %c0_i32_0 = arith.constant 0 : i32
    %c0_i32_1 = arith.constant 0 : i32
    return %c0_i32, %c0_i32_0 : i32, i32
  }
  func.func @transform_3(%arg0: i32) -> (i32, i32) {
    %c0_i32 = arith.constant 0 : i32
    %c0_i32_0 = arith.constant 0 : i32
    %c0_i32_1 = arith.constant 0 : i32
    return %c0_i32, %c0_i32_0 : i32, i32
  }
  func.func @transform_4(%arg0: i32) -> (i32, i32) {
    %c0_i32 = arith.constant 0 : i32
    %c0_i32_0 = arith.constant 0 : i32
    return %arg0, %c0_i32 : i32, i32
  }
  func.func @transform_5(%arg0: i32) -> (i32, i32) {
    %c0_i32 = arith.constant 0 : i32
    %c0_i32_0 = arith.constant 0 : i32
    return %arg0, %c0_i32 : i32, i32
  }
}

</mosaic_0001>

<llo_original>
// kernel: tpu_custom_call.1
$region0: #{tpu_custom_call.1}
  #allocation0 [shape = 'u32[]', space=smem, size = 0x4, offset = 0x4, fixed_abs, tag = 'smem constant byte address 0x4 - core index']
  #allocation1 [shape = 'u32[144,128]{1,0:T(1,128)}', space=vmem, size = 0x12000, scoped, tag = 'internal scratch']
  %s0 = inlined_call_operand.hbm [shape: f32[16,16], index: 0, kind: input, shape index: {}]
  %s1 = inlined_call_operand.hbm [shape: f32[16,16], index: 1, kind: input, shape index: {}]
  %s2 = inlined_call_operand.hbm [shape: f32[16,64], index: 2, kind: input, shape index: {}]
  %s3 = inlined_call_operand.vmem [shape: f32[8,32], index: 3, kind: input, shape index: {}]
  %s4 = inlined_call_operand.hbm [shape: f32[16,16], index: 4, kind: input, shape index: {}]
  %s5 = inlined_call_operand.hbm [shape: f32[16,32], index: 5, kind: output, shape index: {}]
  %s6 = sld [smem:[#allocation0]]
  $region46: #{tpu_custom_call.1} parent=0
    _
  %s8 = ssub.s32 1, %s6
  %s9 = scalar_select 0, %s8, %s6
  $region1: #{tpu_custom_call.1} parent=0
    #allocation2 [shape = 'u8[8192]{0}', space=vmem, size = 0x2000, scoped, tag = 'input window, operand 0, single buffered']
    #allocation3 [shape = 's32[1]{0}', space=sflag, size = 0x4, scoped, tag = 'scoped memory for tpu_custom_call.1']
    #allocation4 [shape = 's32[1]{0}', space=sflag, size = 0x4, scoped, tag = 'scoped memory for tpu_custom_call.1']
    #allocation5 [shape = 'u8[8192]{0}', space=vmem, size = 0x2000, scoped, tag = 'input window, operand 1, single buffered']
    #allocation6 [shape = 's32[1]{0}', space=sflag, size = 0x4, scoped, tag = 'scoped memory for tpu_custom_call.1']
    #allocation7 [shape = 'u8[8192]{0}', space=vmem, size = 0x2000, scoped, tag = 'input window, operand 2, single buffered']
    #allocation8 [shape = 'u8[8192]{0}', space=vmem, size = 0x2000, scoped, tag = 'input window, operand 4, single buffered']
    #allocation9 [shape = 's32[1]{0}', space=sflag, size = 0x4, scoped, tag = 'scoped memory for tpu_custom_call.1']
    #allocation10 [shape = 'u8[8192]{0}', space=vmem, size = 0x2000, scoped, tag = 'output window, operand 0, single buffered']
    %10 = vsyncpa [#allocation3], 0
    %11 = vsyncpa [#allocation6], 0
    %12 = vsyncpa [#allocation9], 0
    %13 = vsyncpa [#allocation4], 0
    // Predicated region
    $region2: #{tpu_custom_call.1} parent=1 // pred_check
      _
    $region3: #{tpu_custom_call.1} parent=1 // pred_check_branch
      %15 = sbr.rel (0) target = $region5
    $region4: #{tpu_custom_call.1} parent=1 // pred_region
      %s17 = ssub.s32 256, 256
      %18 = vsyncadd [#allocation3], %s17
      %s19 = sshll.u32 [#allocation2], 4
      %s20 = int_to_ptr.vmem [resolvable:$true] %s19
      %25 = dma.hbm_to_vmem [thread:$0]  %s0, 256, %s20, [#allocation3], 128, 128, 8
    $region5: #{tpu_custom_call.1} parent=1 // pred_fallthru
      _
    // Predicated region
    $region6: #{tpu_custom_call.1} parent=1 // pred_check
      _
    $region7: #{tpu_custom_call.1} parent=1 // pred_check_branch
      %27 = sbr.rel (0) target = $region9
    $region8: #{tpu_custom_call.1} parent=1 // pred_region
      %s29 = ssub.s32 256, 256
      %30 = vsyncadd [#allocation6], %s29
      %s31 = sshll.u32 [#allocation5], 4
      %s32 = int_to_ptr.vmem [resolvable:$true] %s31
      %37 = dma.hbm_to_vmem [thread:$0]  %s1, 256, %s32, [#allocation6], 128, 128, 8
    $region9: #{tpu_custom_call.1} parent=1 // pred_fallthru
      _
    // Predicated region
    $region10: #{tpu_custom_call.1} parent=1 // pred_check
      _
    $region11: #{tpu_custom_call.1} parent=1 // pred_check_branch
      %39 = sbr.rel (0) target = $region13
    $region12: #{tpu_custom_call.1} parent=1 // pred_region
      %s41 = ssub.s32 256, 256
      %42 = vsyncadd [#allocation6], %s41
      %s43 = sshll.u32 [#allocation7], 4
      %s44 = int_to_ptr.vmem [resolvable:$true] %s43
      %49 = dma.hbm_to_vmem [thread:$0]  %s2, 256, %s44, [#allocation6], 128, 128, 8
    $region13: #{tpu_custom_call.1} parent=1 // pred_fallthru
      _
    // Predicated region
    $region14: #{tpu_custom_call.1} parent=1 // pred_check
      _
    $region15: #{tpu_custom_call.1} parent=1 // pred_check_branch
      %51 = sbr.rel (0) target = $region17
    $region16: #{tpu_custom_call.1} parent=1 // pred_region
      _
    $region17: #{tpu_custom_call.1} parent=1 // pred_fallthru
      _
    // Predicated region
    $region18: #{tpu_custom_call.1} parent=1 // pred_check
      _
    $region19: #{tpu_custom_call.1} parent=1 // pred_check_branch
      %53 = sbr.rel (0) target = $region21
    $region20: #{tpu_custom_call.1} parent=1 // pred_region
      %s55 = ssub.s32 256, 256
      %56 = vsyncadd [#allocation9], %s55
      %s57 = sshll.u32 [#allocation8], 4
      %s58 = int_to_ptr.vmem [resolvable:$true] %s57
      %63 = dma.hbm_to_vmem [thread:$0]  %s4, 256, %s58, [#allocation9], 128, 128, 8
    $region21: #{tpu_custom_call.1} parent=1 // pred_fallthru
      _
    // Predicated region
    $region22: #{tpu_custom_call.1} parent=1 // pred_check
      _
    $region23: #{tpu_custom_call.1} parent=1 // pred_check_branch
      %65 = sbr.rel (0) target = $region25
    $region24: #{tpu_custom_call.1} parent=1 // pred_region
      %66 = dma.done [#allocation3], 256
    $region25: #{tpu_custom_call.1} parent=1 // pred_fallthru
      _
    // Predicated region
    $region26: #{tpu_custom_call.1} parent=1 // pred_check
      _
    $region27: #{tpu_custom_call.1} parent=1 // pred_check_branch
      %68 = sbr.rel (0) target = $region29
    $region28: #{tpu_custom_call.1} parent=1 // pred_region
      %69 = dma.done [#allocation6], 256
    $region29: #{tpu_custom_call.1} parent=1 // pred_fallthru
      _
    // Predicated region
    $region30: #{tpu_custom_call.1} parent=1 // pred_check
      _
    $region31: #{tpu_custom_call.1} parent=1 // pred_check_branch
      %71 = sbr.rel (0) target = $region33
    $region32: #{tpu_custom_call.1} parent=1 // pred_region
      %72 = dma.done [#allocation6], 256
    $region33: #{tpu_custom_call.1} parent=1 // pred_fallthru
      _
    // Predicated region
    $region34: #{tpu_custom_call.1} parent=1 // pred_check
      _
    $region35: #{tpu_custom_call.1} parent=1 // pred_check_branch
      %74 = sbr.rel (0) target = $region37
    $region36: #{tpu_custom_call.1} parent=1 // pred_region
      %75 = dma.done [#allocation9], 256
    $region37: #{tpu_custom_call.1} parent=1 // pred_fallthru
      _
    %v77 = vld [vmem:[#allocation2] sm:$0xff]
    %v78 = vld [vmem:[#allocation2 + $0x8] sm:$0xff]
    %v79 = vpack.c.bf16 %v78, %v77
    %v80 = vld [vmem:[#allocation5] sm:$0xff]
    %v81 = vld [vmem:[#allocation5 + $0x8] sm:$0xff]
    %v82 = vpack.c.bf16 %v81, %v80
    %v83 = vld [vmem:[#allocation7] sm:$0xff]
    %v84 = vld [vmem:[#allocation7 + $0x8] sm:$0xff]
    %v85 = vpack.c.bf16 %v84, %v83
    %vm86 = vcmask 130048
    %v88 = vsel %vm86, %v79, 0
    %90 = vmatprep.subr.bf16.mxu0 0
    %91 = vmatpush1.bf16.msra.mxu0 %v85
    %92 = vmatprep.subr.bf16.mxu0 0
    %93 = vmatpush1.bf16.msra.mxu0 0
    %94 = vmatprep.subr.bf16.mxu0 0
    %95 = vmatpush1.bf16.msra.mxu0 0
    %96 = vmatprep.subr.bf16.mxu0 0
    %97 = vmatpush1.bf16.msra.mxu0 0
    %98 = vmatprep.subr.bf16.mxu0 0
    %99 = vmatpush1.bf16.msra.mxu0 0
    %100 = vmatprep.subr.bf16.mxu0 0
    %101 = vmatpush1.bf16.msra.mxu0 0
    %102 = vmatprep.subr.bf16.mxu0 0
    %103 = vmatpush1.bf16.msra.mxu0 0
    %104 = vmatprep.subr.bf16.mxu0 0
    %105 = vmatpush1.bf16.msra.mxu0 0
    %106 = vmatprep.subr.bf16.mxu0 0
    %107 = vmatpush1.bf16.msra.mxu0 0
    %108 = vmatprep.subr.bf16.mxu0 0
    %109 = vmatpush1.bf16.msra.mxu0 0
    %110 = vmatprep.subr.bf16.mxu0 0
    %111 = vmatpush1.bf16.msra.mxu0 0
    %112 = vmatprep.subr.bf16.mxu0 0
    %113 = vmatpush1.bf16.msra.mxu0 0
    %114 = vmatprep.subr.bf16.mxu0 0
    %115 = vmatpush1.bf16.msra.mxu0 0
    %116 = vmatprep.subr.bf16.mxu0 0
    %117 = vmatpush1.bf16.msra.mxu0 0
    %118 = vmatprep.subr.bf16.mxu0 0
    %119 = vmatpush1.bf16.msra.mxu0 0
    %120 = vmatprep.subr.bf16.mxu0 0
    %121 = vmatpush1.bf16.msra.mxu0 0
    %122 = vmatprep.mubr.bf16.mxu0 0
    %123 = vmatmul.mubr.bf16.gmra.mrb[0].mxu0 %v88
    %v124 = vpop.f32.mrb[0].mxu0
    %v125 = vadd.f32 0.0, %v124
    %v126 = vpop.f32.mrb[0].mxu0
    %v127 = vpop.f32.mrb[0].mxu0
    %v128 = vadd.f32 0.0, %v127
    %v129 = vpop.f32.mrb[0].mxu0
    %130 = vdwg.mxu0
    %v132 = vsel %vm86, %v82, 0
    %134 = vmatprep.subr.bf16.mxu0 0
    %135 = vmatpush1.bf16.msra.mxu0 %v85
    %136 = vmatprep.subr.bf16.mxu0 0
    %137 = vmatpush1.bf16.msra.mxu0 0
    %138 = vmatprep.subr.bf16.mxu0 0
    %139 = vmatpush1.bf16.msra.mxu0 0
    %140 = vmatprep.subr.bf16.mxu0 0
    %141 = vmatpush1.bf16.msra.mxu0 0
    %142 = vmatprep.subr.bf16.mxu0 0
    %143 = vmatpush1.bf16.msra.mxu0 0
    %144 = vmatprep.subr.bf16.mxu0 0
    %145 = vmatpush1.bf16.msra.mxu0 0
    %146 = vmatprep.subr.bf16.mxu0 0
    %147 = vmatpush1.bf16.msra.mxu0 0
    %148 = vmatprep.subr.bf16.mxu0 0
    %149 = vmatpush1.bf16.msra.mxu0 0
    %150 = vmatprep.subr.bf16.mxu0 0
    %151 = vmatpush1.bf16.msra.mxu0 0
    %152 = vmatprep.subr.bf16.mxu0 0
    %153 = vmatpush1.bf16.msra.mxu0 0
    %154 = vmatprep.subr.bf16.mxu0 0
    %155 = vmatpush1.bf16.msra.mxu0 0
    %156 = vmatprep.subr.bf16.mxu0 0
    %157 = vmatpush1.bf16.msra.mxu0 0
    %158 = vmatprep.subr.bf16.mxu0 0
    %159 = vmatpush1.bf16.msra.mxu0 0
    %160 = vmatprep.subr.bf16.mxu0 0
    %161 = vmatpush1.bf16.msra.mxu0 0
    %162 = vmatprep.subr.bf16.mxu0 0
    %163 = vmatpush1.bf16.msra.mxu0 0
    %164 = vmatprep.subr.bf16.mxu0 0
    %165 = vmatpush1.bf16.msra.mxu0 0
    %166 = vmatprep.mubr.bf16.mxu0 0
    %167 = vmatmul.mubr.bf16.gmra.mrb[0].mxu0 %v132
    %v168 = vpop.f32.mrb[0].mxu0
    %v169 = vadd.f32 0.0, %v168
    %v170 = vpop.f32.mrb[0].mxu0
    %v171 = vpop.f32.mrb[0].mxu0
    %v172 = vadd.f32 0.0, %v171
    %v173 = vpop.f32.mrb[0].mxu0
    %174 = vdwg.mxu0
    %v175 = vld [vmem:[%s3] sm:$0xff]
    %v176 = vpack.c.bf16 %v175, %v175
    %v177 = vpack.c.bf16 %v128, %v125
    %vm178 = vcmask 261120
    %v180 = vsel %vm178, %v176, 0
    %v183 = vsel %vm178, %v177, 0
    %185 = vmatprep.subr.bf16.mxu0 0
    %186 = vmatpush1.bf16.xpose.msra.mxu0 %v183
    %187 = vmatprep.subr.bf16.mxu0 0
    %188 = vmatpush1.bf16.xpose.msra.mxu0 0
    %189 = vmatprep.subr.bf16.mxu0 0
    %190 = vmatpush1.bf16.xpose.msra.mxu0 0
    %191 = vmatprep.subr.bf16.mxu0 0
    %192 = vmatpush1.bf16.xpose.msra.mxu0 0
    %193 = vmatprep.subr.bf16.mxu0 0
    %194 = vmatpush1.bf16.xpose.msra.mxu0 0
    %195 = vmatprep.subr.bf16.mxu0 0
    %196 = vmatpush1.bf16.xpose.msra.mxu0 0
    %197 = vmatprep.subr.bf16.mxu0 0
    %198 = vmatpush1.bf16.xpose.msra.mxu0 0
    %199 = vmatprep.subr.bf16.mxu0 0
    %200 = vmatpush1.bf16.xpose.msra.mxu0 0
    %201 = vmatprep.subr.bf16.mxu0 0
    %202 = vmatpush1.bf16.xpose.msra.mxu0 0
    %203 = vmatprep.subr.bf16.mxu0 0
    %204 = vmatpush1.bf16.xpose.msra.mxu0 0
    %205 = vmatprep.subr.bf16.mxu0 0
    %206 = vmatpush1.bf16.xpose.msra.mxu0 0
    %207 = vmatprep.subr.bf16.mxu0 0
    %208 = vmatpush1.bf16.xpose.msra.mxu0 0
    %209 = vmatprep.subr.bf16.mxu0 0
    %210 = vmatpush1.bf16.xpose.msra.mxu0 0
    %211 = vmatprep.subr.bf16.mxu0 0
    %212 = vmatpush1.bf16.xpose.msra.mxu0 0
    %213 = vmatprep.subr.bf16.mxu0 0
    %214 = vmatpush1.bf16.xpose.msra.mxu0 0
    %215 = vmatprep.subr.bf16.mxu0 0
    %216 = vmatpush1.bf16.xpose.msra.mxu0 0
    %217 = vmatprep.mubr.bf16.mxu0 0
    %218 = vmatmul.mubr.bf16.gmra.mrb[0].mxu0 %v180
    %v219 = vpop.f32.mrb[0].mxu0
    %v220 = vadd.f32 0.0, %v219
    %v221 = vpop.f32.mrb[0].mxu0
    %v222 = vpop.f32.mrb[0].mxu0
    %v223 = vpop.f32.mrb[0].mxu0
    %224 = vdwg.mxu0
    %v225 = vpack.c.bf16 %v172, %v169
    %v227 = vrot.slane %v176, 2
    %v229 = vsel %vm178, %v225, 0
    %v232 = vsel %vm178, %v227, 0
    %234 = vmatprep.subr.bf16.mxu0 0
    %235 = vmatpush1.bf16.xpose.msra.mxu0 %v232
    %236 = vmatprep.subr.bf16.mxu0 0
    %237 = vmatpush1.bf16.xpose.msra.mxu0 0
    %238 = vmatprep.subr.bf16.mxu0 0
    %239 = vmatpush1.bf16.xpose.msra.mxu0 0
    %240 = vmatprep.subr.bf16.mxu0 0
    %241 = vmatpush1.bf16.xpose.msra.mxu0 0
    %242 = vmatprep.subr.bf16.mxu0 0
    %243 = vmatpush1.bf16.xpose.msra.mxu0 0
    %244 = vmatprep.subr.bf16.mxu0 0
    %245 = vmatpush1.bf16.xpose.msra.mxu0 0
    %246 = vmatprep.subr.bf16.mxu0 0
    %247 = vmatpush1.bf16.xpose.msra.mxu0 0
    %248 = vmatprep.subr.bf16.mxu0 0
    %249 = vmatpush1.bf16.xpose.msra.mxu0 0
    %250 = vmatprep.subr.bf16.mxu0 0
    %251 = vmatpush1.bf16.xpose.msra.mxu0 0
    %252 = vmatprep.subr.bf16.mxu0 0
    %253 = vmatpush1.bf16.xpose.msra.mxu0 0
    %254 = vmatprep.subr.bf16.mxu0 0
    %255 = vmatpush1.bf16.xpose.msra.mxu0 0
    %256 = vmatprep.subr.bf16.mxu0 0
    %257 = vmatpush1.bf16.xpose.msra.mxu0 0
    %258 = vmatprep.subr.bf16.mxu0 0
    %259 = vmatpush1.bf16.xpose.msra.mxu0 0
    %260 = vmatprep.subr.bf16.mxu0 0
    %261 = vmatpush1.bf16.xpose.msra.mxu0 0
    %262 = vmatprep.subr.bf16.mxu0 0
    %263 = vmatpush1.bf16.xpose.msra.mxu0 0
    %264 = vmatprep.subr.bf16.mxu0 0
    %265 = vmatpush1.bf16.xpose.msra.mxu0 0
    %266 = vmatprep.mubr.bf16.mxu0 0
    %267 = vmatmul.mubr.bf16.gmra.mrb[0].mxu0 %v229
    %v268 = vpop.f32.mrb[0].mxu0
    %v269 = vadd.f32 0.0, %v268
    %v270 = vpop.f32.mrb[0].mxu0
    %v271 = vpop.f32.mrb[0].mxu0
    %v272 = vadd.f32 0.0, %v271
    %v273 = vpop.f32.mrb[0].mxu0
    %274 = vdwg.mxu0
    %v275 = vld [vmem:[#allocation8] sm:$0xff]
    %v276 = vld [vmem:[#allocation8 + $0x8] sm:$0xff]
    %vm277 = vcmp.ne.f32.partialorder %v275, 0.0
    %vm278 = vcmp.ne.f32.partialorder %v276, 0.0
    %280 = vset.pattern.permute.xlu0 0
    %281 = vperm.xlu0 %280, %v269
    %v282 = vpop.permute.xlu0 %281
    %285 = vset.pattern.permute.xlu0 0
    %286 = vperm.xlu0 %285, %v272
    %v287 = vpop.permute.xlu0 %286
    %v289 = vlaneseq
    %v290 = vshrl.u32 %v289, 7
    %v291 = vsub.s32 0, %v290
    %v292 = vrot.slane %v220, %v291
    %v293 = vadd.f32 %v282, %v292
    %v294 = vadd.f32 %v287, %v292
    %v295 = vmul.f32 %v275, %v293
    %v296 = vmul.f32 %v276, %v294
    %vm297 = vcmp.ge.f32.partialorder %v295, 0.0
    %vm298 = vcmp.ge.f32.partialorder %v296, 0.0
    %v299 = vmul.f32 %v295, 0.2
    %v300 = vmul.f32 %v296, 0.2
    %v301 = vsel %vm297, %v295, %v299
    %v302 = vsel %vm298, %v296, %v300
    %v303 = vsel %vm277, %v301, -1e+30
    %v304 = vsel %vm278, %v302, -1e+30
    %v305 = vsel %vm86, %v303, -inf
    %306 = vmax.xlane.f32.xlu0 %v305
    %v307 = vpop.xlane.xlu0 %306
    %v308 = vsel %vm86, %v304, -inf
    %309 = vmax.xlane.f32.xlu0 %v308
    %v310 = vpop.xlane.xlu0 %309
    %v311 = vsub.f32 %v303, %v307
    %v312 = vsub.f32 %v304, %v310
    %v313 = vmul.f32 %v311, 1.442695
    %v314 = vpow.pop %v313
    %v315 = vmul.f32 %v312, 1.442695
    %v316 = vpow.pop %v315
    %v317 = vsel %vm277, %v314, 0.0
    %v318 = vsel %vm278, %v316, 0.0
    %v319 = vsel %vm86, %v317, 0.0
    %320 = vadd.xlane.f32.xlu0 %v319
    %v321 = vpop.xlane.xlu0 %320
    %v322 = vsel %vm86, %v318, 0.0
    %323 = vadd.xlane.f32.xlu0 %v322
    %v324 = vpop.xlane.xlu0 %323
    %vm325 = vcmp.gt.f32.partialorder %v321, 0.0
    %vm326 = vcmp.gt.f32.partialorder %v324, 0.0
    %v327 = vsel %vm325, %v321, 1.0
    %v328 = vsel %vm326, %v324, 1.0
    %v329 = vrcp.pop %v327
    %v330 = vrcp.pop %v328
    %v331 = vmul.f32 %v317, %v329
    %v332 = vmul.f32 %v318, %v330
    %v333 = vpack.c.bf16 %v332, %v331
    %v335 = vsel %vm86, %v333, 0
    %337 = vmatprep.subr.bf16.mxu0 0
    %338 = vmatpush1.bf16.msra.mxu0 %v177
    %339 = vmatprep.subr.bf16.mxu0 0
    %340 = vmatpush1.bf16.msra.mxu0 0
    %341 = vmatprep.subr.bf16.mxu0 0
    %342 = vmatpush1.bf16.msra.mxu0 0
    %343 = vmatprep.subr.bf16.mxu0 0
    %344 = vmatpush1.bf16.msra.mxu0 0
    %345 = vmatprep.subr.bf16.mxu0 0
    %346 = vmatpush1.bf16.msra.mxu0 0
    %347 = vmatprep.subr.bf16.mxu0 0
    %348 = vmatpush1.bf16.msra.mxu0 0
    %349 = vmatprep.subr.bf16.mxu0 0
    %350 = vmatpush1.bf16.msra.mxu0 0
    %351 = vmatprep.subr.bf16.mxu0 0
    %352 = vmatpush1.bf16.msra.mxu0 0
    %353 = vmatprep.subr.bf16.mxu0 0
    %354 = vmatpush1.bf16.msra.mxu0 0
    %355 = vmatprep.subr.bf16.mxu0 0
    %356 = vmatpush1.bf16.msra.mxu0 0
    %357 = vmatprep.subr.bf16.mxu0 0
    %358 = vmatpush1.bf16.msra.mxu0 0
    %359 = vmatprep.subr.bf16.mxu0 0
    %360 = vmatpush1.bf16.msra.mxu0 0
    %361 = vmatprep.subr.bf16.mxu0 0
    %362 = vmatpush1.bf16.msra.mxu0 0
    %363 = vmatprep.subr.bf16.mxu0 0
    %364 = vmatpush1.bf16.msra.mxu0 0
    %365 = vmatprep.subr.bf16.mxu0 0
    %366 = vmatpush1.bf16.msra.mxu0 0
    %367 = vmatprep.subr.bf16.mxu0 0
    %368 = vmatpush1.bf16.msra.mxu0 0
    %369 = vmatprep.mubr.bf16.mxu0 0
    %370 = vmatmul.mubr.bf16.gmra.mrb[0].mxu0 %v335
    %v371 = vpop.f32.mrb[0].mxu0
    %v372 = vadd.f32 0.0, %v371
    %v373 = vpop.f32.mrb[0].mxu0
    %v374 = vpop.f32.mrb[0].mxu0
    %v375 = vadd.f32 0.0, %v374
    %v376 = vpop.f32.mrb[0].mxu0
    %377 = vdwg.mxu0
    %378 = vset.pattern.permute.xlu0 1
    %379 = vperm.xlu0 %378, %v269
    %v380 = vpop.permute.xlu0 %379
    %382 = vset.pattern.permute.xlu0 1
    %383 = vperm.xlu0 %382, %v272
    %v384 = vpop.permute.xlu0 %383
    %v386 = vlaneseq
    %v387 = vshrl.u32 %v386, 7
    %v388 = vsub.s32 1, %v387
    %v389 = vrot.slane %v220, %v388
    %v390 = vadd.f32 %v380, %v389
    %v391 = vadd.f32 %v384, %v389
    %v392 = vmul.f32 %v275, %v390
    %v393 = vmul.f32 %v276, %v391
    %vm394 = vcmp.ge.f32.partialorder %v392, 0.0
    %vm395 = vcmp.ge.f32.partialorder %v393, 0.0
    %v396 = vmul.f32 %v392, 0.2
    %v397 = vmul.f32 %v393, 0.2
    %v398 = vsel %vm394, %v392, %v396
    %v399 = vsel %vm395, %v393, %v397
    %v400 = vsel %vm277, %v398, -1e+30
    %v401 = vsel %vm278, %v399, -1e+30
    %v402 = vsel %vm86, %v400, -inf
    %403 = vmax.xlane.f32.xlu0 %v402
    %v404 = vpop.xlane.xlu0 %403
    %v405 = vsel %vm86, %v401, -inf
    %406 = vmax.xlane.f32.xlu0 %v405
    %v407 = vpop.xlane.xlu0 %406
    %v408 = vsub.f32 %v400, %v404
    %v409 = vsub.f32 %v401, %v407
    %v410 = vmul.f32 %v408, 1.442695
    %v411 = vpow.pop %v410
    %v412 = vmul.f32 %v409, 1.442695
    %v413 = vpow.pop %v412
    %v414 = vsel %vm277, %v411, 0.0
    %v415 = vsel %vm278, %v413, 0.0
    %v416 = vsel %vm86, %v414, 0.0
    %417 = vadd.xlane.f32.xlu0 %v416
    %v418 = vpop.xlane.xlu0 %417
    %v419 = vsel %vm86, %v415, 0.0
    %420 = vadd.xlane.f32.xlu0 %v419
    %v421 = vpop.xlane.xlu0 %420
    %vm422 = vcmp.gt.f32.partialorder %v418, 0.0
    %vm423 = vcmp.gt.f32.partialorder %v421, 0.0
    %v424 = vsel %vm422, %v418, 1.0
    %v425 = vsel %vm423, %v421, 1.0
    %v426 = vrcp.pop %v424
    %v427 = vrcp.pop %v425
    %v428 = vmul.f32 %v414, %v426
    %v429 = vmul.f32 %v415, %v427
    %v430 = vpack.c.bf16 %v429, %v428
    %432 = vrot.lane.b32.xlu0 %v177, 120
    %v433 = vpop.permute.xlu0 %432
    %v436 = vsel %vm86, %v430, 0
    %438 = vmatprep.subr.bf16.mxu0 0
    %439 = vmatpush1.bf16.msra.mxu0 %v433
    %440 = vmatprep.subr.bf16.mxu0 0
    %441 = vmatpush1.bf16.msra.mxu0 0
    %442 = vmatprep.subr.bf16.mxu0 0
    %443 = vmatpush1.bf16.msra.mxu0 0
    %444 = vmatprep.subr.bf16.mxu0 0
    %445 = vmatpush1.bf16.msra.mxu0 0
    %446 = vmatprep.subr.bf16.mxu0 0
    %447 = vmatpush1.bf16.msra.mxu0 0
    %448 = vmatprep.subr.bf16.mxu0 0
    %449 = vmatpush1.bf16.msra.mxu0 0
    %450 = vmatprep.subr.bf16.mxu0 0
    %451 = vmatpush1.bf16.msra.mxu0 0
    %452 = vmatprep.subr.bf16.mxu0 0
    %453 = vmatpush1.bf16.msra.mxu0 0
    %454 = vmatprep.subr.bf16.mxu0 0
    %455 = vmatpush1.bf16.msra.mxu0 0
    %456 = vmatprep.subr.bf16.mxu0 0
    %457 = vmatpush1.bf16.msra.mxu0 0
    %458 = vmatprep.subr.bf16.mxu0 0
    %459 = vmatpush1.bf16.msra.mxu0 0
    %460 = vmatprep.subr.bf16.mxu0 0
    %461 = vmatpush1.bf16.msra.mxu0 0
    %462 = vmatprep.subr.bf16.mxu0 0
    %463 = vmatpush1.bf16.msra.mxu0 0
    %464 = vmatprep.subr.bf16.mxu0 0
    %465 = vmatpush1.bf16.msra.mxu0 0
    %466 = vmatprep.subr.bf16.mxu0 0
    %467 = vmatpush1.bf16.msra.mxu0 0
    %468 = vmatprep.subr.bf16.mxu0 0
    %469 = vmatpush1.bf16.msra.mxu0 0
    %470 = vmatprep.mubr.bf16.mxu0 0
    %471 = vmatmul.mubr.bf16.gmra.mrb[0].mxu0 %v436
    %v472 = vpop.f32.mrb[0].mxu0
    %v473 = vadd.f32 0.0, %v472
    %v474 = vpop.f32.mrb[0].mxu0
    %v475 = vpop.f32.mrb[0].mxu0
    %v476 = vadd.f32 0.0, %v475
    %v477 = vpop.f32.mrb[0].mxu0
    %478 = vdwg.mxu0
    %479 = vset.pattern.permute.xlu0 2
    %480 = vperm.xlu0 %479, %v269
    %v481 = vpop.permute.xlu0 %480
    %483 = vset.pattern.permute.xlu0 2
    %484 = vperm.xlu0 %483, %v272
    %v485 = vpop.permute.xlu0 %484
    %v487 = vlaneseq
    %v488 = vshrl.u32 %v487, 7
    %v489 = vsub.s32 2, %v488
    %v490 = vrot.slane %v220, %v489
    %v491 = vadd.f32 %v481, %v490
    %v492 = vadd.f32 %v485, %v490
    %v493 = vmul.f32 %v275, %v491
    %v494 = vmul.f32 %v276, %v492
    %vm495 = vcmp.ge.f32.partialorder %v493, 0.0
    %vm496 = vcmp.ge.f32.partialorder %v494, 0.0
    %v497 = vmul.f32 %v493, 0.2
    %v498 = vmul.f32 %v494, 0.2
    %v499 = vsel %vm495, %v493, %v497
    %v500 = vsel %vm496, %v494, %v498
    %v501 = vsel %vm277, %v499, -1e+30
    %v502 = vsel %vm278, %v500, -1e+30
    %v503 = vsel %vm86, %v501, -inf
    %504 = vmax.xlane.f32.xlu0 %v503
    %v505 = vpop.xlane.xlu0 %504
    %v506 = vsel %vm86, %v502, -inf
    %507 = vmax.xlane.f32.xlu0 %v506
    %v508 = vpop.xlane.xlu0 %507
    %v509 = vsub.f32 %v501, %v505
    %v510 = vsub.f32 %v502, %v508
    %v511 = vmul.f32 %v509, 1.442695
    %v512 = vpow.pop %v511
    %v513 = vmul.f32 %v510, 1.442695
    %v514 = vpow.pop %v513
    %v515 = vsel %vm277, %v512, 0.0
    %v516 = vsel %vm278, %v514, 0.0
    %v517 = vsel %vm86, %v515, 0.0
    %518 = vadd.xlane.f32.xlu0 %v517
    %v519 = vpop.xlane.xlu0 %518
    %v520 = vsel %vm86, %v516, 0.0
    %521 = vadd.xlane.f32.xlu0 %v520
    %v522 = vpop.xlane.xlu0 %521
    %vm523 = vcmp.gt.f32.partialorder %v519, 0.0
    %vm524 = vcmp.gt.f32.partialorder %v522, 0.0
    %v525 = vsel %vm523, %v519, 1.0
    %v526 = vsel %vm524, %v522, 1.0
    %v527 = vrcp.pop %v525
    %v528 = vrcp.pop %v526
    %v529 = vmul.f32 %v515, %v527
    %v530 = vmul.f32 %v516, %v528
    %v531 = vpack.c.bf16 %v530, %v529
    %532 = vrot.lane.b32.xlu0 %v177, 112
    %v533 = vpop.permute.xlu0 %532
    %v536 = vsel %vm86, %v531, 0
    %538 = vmatprep.subr.bf16.mxu0 0
    %539 = vmatpush1.bf16.msra.mxu0 %v533
    %540 = vmatprep.subr.bf16.mxu0 0
    %541 = vmatpush1.bf16.msra.mxu0 0
    %542 = vmatprep.subr.bf16.mxu0 0
    %543 = vmatpush1.bf16.msra.mxu0 0
    %544 = vmatprep.subr.bf16.mxu0 0
    %545 = vmatpush1.bf16.msra.mxu0 0
    %546 = vmatprep.subr.bf16.mxu0 0
    %547 = vmatpush1.bf16.msra.mxu0 0
    %548 = vmatprep.subr.bf16.mxu0 0
    %549 = vmatpush1.bf16.msra.mxu0 0
    %550 = vmatprep.subr.bf16.mxu0 0
    %551 = vmatpush1.bf16.msra.mxu0 0
    %552 = vmatprep.subr.bf16.mxu0 0
    %553 = vmatpush1.bf16.msra.mxu0 0
    %554 = vmatprep.subr.bf16.mxu0 0
    %555 = vmatpush1.bf16.msra.mxu0 0
    %556 = vmatprep.subr.bf16.mxu0 0
    %557 = vmatpush1.bf16.msra.mxu0 0
    %558 = vmatprep.subr.bf16.mxu0 0
    %559 = vmatpush1.bf16.msra.mxu0 0
    %560 = vmatprep.subr.bf16.mxu0 0
    %561 = vmatpush1.bf16.msra.mxu0 0
    %562 = vmatprep.subr.bf16.mxu0 0
    %563 = vmatpush1.bf16.msra.mxu0 0
    %564 = vmatprep.subr.bf16.mxu0 0
    %565 = vmatpush1.bf16.msra.mxu0 0
    %566 = vmatprep.subr.bf16.mxu0 0
    %567 = vmatpush1.bf16.msra.mxu0 0
    %568 = vmatprep.subr.bf16.mxu0 0
    %569 = vmatpush1.bf16.msra.mxu0 0
    %570 = vmatprep.mubr.bf16.mxu0 0
    %571 = vmatmul.mubr.bf16.gmra.mrb[0].mxu0 %v536
    %v572 = vpop.f32.mrb[0].mxu0
    %v573 = vadd.f32 0.0, %v572
    %v574 = vpop.f32.mrb[0].mxu0
    %v575 = vpop.f32.mrb[0].mxu0
    %v576 = vadd.f32 0.0, %v575
    %v577 = vpop.f32.mrb[0].mxu0
    %578 = vdwg.mxu0
    %579 = vset.pattern.permute.xlu0 3
    %580 = vperm.xlu0 %579, %v269
    %v581 = vpop.permute.xlu0 %580
    %583 = vset.pattern.permute.xlu0 3
    %584 = vperm.xlu0 %583, %v272
    %v585 = vpop.permute.xlu0 %584
    %v587 = vlaneseq
    %v588 = vshrl.u32 %v587, 7
    %v589 = vsub.s32 3, %v588
    %v590 = vrot.slane %v220, %v589
    %v591 = vadd.f32 %v581, %v590
    %v592 = vadd.f32 %v585, %v590
    %v593 = vmul.f32 %v275, %v591
    %v594 = vmul.f32 %v276, %v592
    %vm595 = vcmp.ge.f32.partialorder %v593, 0.0
    %vm596 = vcmp.ge.f32.partialorder %v594, 0.0
    %v597 = vmul.f32 %v593, 0.2
    %v598 = vmul.f32 %v594, 0.2
    %v599 = vsel %vm595, %v593, %v597
    %v600 = vsel %vm596, %v594, %v598
    %v601 = vsel %vm277, %v599, -1e+30
    %v602 = vsel %vm278, %v600, -1e+30
    %v603 = vsel %vm86, %v601, -inf
    %604 = vmax.xlane.f32.xlu0 %v603
    %v605 = vpop.xlane.xlu0 %604
    %v606 = vsel %vm86, %v602, -inf
    %607 = vmax.xlane.f32.xlu0 %v606
    %v608 = vpop.xlane.xlu0 %607
    %v609 = vsub.f32 %v601, %v605
    %v610 = vsub.f32 %v602, %v608
    %v611 = vmul.f32 %v609, 1.442695
    %v612 = vpow.pop %v611
    %v613 = vmul.f32 %v610, 1.442695
    %v614 = vpow.pop %v613
    %v615 = vsel %vm277, %v612, 0.0
    %v616 = vsel %vm278, %v614, 0.0
    %v617 = vsel %vm86, %v615, 0.0
    %618 = vadd.xlane.f32.xlu0 %v617
    %v619 = vpop.xlane.xlu0 %618
    %v620 = vsel %vm86, %v616, 0.0
    %621 = vadd.xlane.f32.xlu0 %v620
    %v622 = vpop.xlane.xlu0 %621
    %vm623 = vcmp.gt.f32.partialorder %v619, 0.0
    %vm624 = vcmp.gt.f32.partialorder %v622, 0.0
    %v625 = vsel %vm623, %v619, 1.0
    %v626 = vsel %vm624, %v622, 1.0
    %v627 = vrcp.pop %v625
    %v628 = vrcp.pop %v626
    %v629 = vmul.f32 %v615, %v627
    %v630 = vmul.f32 %v616, %v628
    %v631 = vpack.c.bf16 %v630, %v629
    %632 = vrot.lane.b32.xlu0 %v177, 104
    %v633 = vpop.permute.xlu0 %632
    %v636 = vsel %vm86, %v631, 0
    %638 = vmatprep.subr.bf16.mxu0 0
    %639 = vmatpush1.bf16.msra.mxu0 %v633
    %640 = vmatprep.subr.bf16.mxu0 0
    %641 = vmatpush1.bf16.msra.mxu0 0
    %642 = vmatprep.subr.bf16.mxu0 0
    %643 = vmatpush1.bf16.msra.mxu0 0
    %644 = vmatprep.subr.bf16.mxu0 0
    %645 = vmatpush1.bf16.msra.mxu0 0
    %646 = vmatprep.subr.bf16.mxu0 0
    %647 = vmatpush1.bf16.msra.mxu0 0
    %648 = vmatprep.subr.bf16.mxu0 0
    %649 = vmatpush1.bf16.msra.mxu0 0
    %650 = vmatprep.subr.bf16.mxu0 0
    %651 = vmatpush1.bf16.msra.mxu0 0
    %652 = vmatprep.subr.bf16.mxu0 0
    %653 = vmatpush1.bf16.msra.mxu0 0
    %654 = vmatprep.subr.bf16.mxu0 0
    %655 = vmatpush1.bf16.msra.mxu0 0
    %656 = vmatprep.subr.bf16.mxu0 0
    %657 = vmatpush1.bf16.msra.mxu0 0
    %658 = vmatprep.subr.bf16.mxu0 0
    %659 = vmatpush1.bf16.msra.mxu0 0
    %660 = vmatprep.subr.bf16.mxu0 0
    %661 = vmatpush1.bf16.msra.mxu0 0
    %662 = vmatprep.subr.bf16.mxu0 0
    %663 = vmatpush1.bf16.msra.mxu0 0
    %664 = vmatprep.subr.bf16.mxu0 0
    %665 = vmatpush1.bf16.msra.mxu0 0
    %666 = vmatprep.subr.bf16.mxu0 0
    %667 = vmatpush1.bf16.msra.mxu0 0
    %668 = vmatprep.subr.bf16.mxu0 0
    %669 = vmatpush1.bf16.msra.mxu0 0
    %670 = vmatprep.mubr.bf16.mxu0 0
    %671 = vmatmul.mubr.bf16.gmra.mrb[0].mxu0 %v636
    %v672 = vpop.f32.mrb[0].mxu0
    %v673 = vadd.f32 0.0, %v672
    %v674 = vpop.f32.mrb[0].mxu0
    %v675 = vpop.f32.mrb[0].mxu0
    %v676 = vadd.f32 0.0, %v675
    %v677 = vpop.f32.mrb[0].mxu0
    %678 = vdwg.mxu0
    %681 = vrot.lane.b32.xlu0 %v473, 8
    %v682 = vpop.permute.xlu0 %681
    %683 = vrot.lane.b32.xlu0 %v476, 8
    %v684 = vpop.permute.xlu0 %683
    %689 = vrot.lane.b32.xlu0 %v573, 16
    %v690 = vpop.permute.xlu0 %689
    %691 = vrot.lane.b32.xlu0 %v576, 16
    %v692 = vpop.permute.xlu0 %691
    %697 = vrot.lane.b32.xlu0 %v673, 24
    %v698 = vpop.permute.xlu0 %697
    %699 = vrot.lane.b32.xlu0 %v676, 24
    %v700 = vpop.permute.xlu0 %699
    %vm703 = vcmask 64512
    %v704 = vsel %vm703, %v372, %v682
    %v705 = vsel %vm703, %v375, %v684
    %v706 = vsel %vm86, %v704, %v690
    %v707 = vsel %vm86, %v705, %v692
    %vm708 = vcmask 195584
    %v709 = vsel %vm708, %v706, %v698
    %v710 = vsel %vm708, %v707, %v700
    %vm711 = vcmp.gt.f32.partialorder %v709, 0.0
    %vm712 = vcmp.gt.f32.partialorder %v710, 0.0
    %v713 = vmin.f32 %v709, 0.0
    %v714 = vmin.f32 %v710, 0.0
    %v715 = vmul.f32 %v713, 1.442695
    %v716 = vpow.pop %v715
    %v717 = vmul.f32 %v714, 1.442695
    %v718 = vpow.pop %v717
    %v719 = vsub.f32 %v716, 1.0
    %v720 = vsub.f32 %v718, 1.0
    %v721 = vsel %vm711, %v709, %v719
    %v722 = vsel %vm712, %v710, %v720
    %725 = vrot.lane.b32.xlu0 %v169, 96
    %v726 = vpop.permute.xlu0 %725
    %727 = vrot.lane.b32.xlu0 %v172, 96
    %v728 = vpop.permute.xlu0 %727
    %v731 = vadd.f32 %v721, %v726
    %v732 = vadd.f32 %v722, %v728
    %733 = vst.msk [vmem:[#allocation10] sm:$0xff] %vm178, %v731
    %734 = vst.msk [vmem:[#allocation10 + $0x8] sm:$0xff] %vm178, %v732
    // Predicated region
    $region38: #{tpu_custom_call.1} parent=1 // pred_check
      _
    $region39: #{tpu_custom_call.1} parent=1 // pred_check_branch
      %736 = sbr.rel (0) target = $region41
    $region40: #{tpu_custom_call.1} parent=1 // pred_region
      %s738 = ssub.s32 256, 256
      %739 = vsyncadd [#allocation4], %s738
      %s740 = sshll.u32 [#allocation10], 4
      %s741 = int_to_ptr.vmem [resolvable:$true] %s740
      %746 = dma.vmem_to_hbm [thread:$0]  %s741, 256, %s5, [#allocation4], 128, 128, 8
    $region41: #{tpu_custom_call.1} parent=1 // pred_fallthru
      _
    // Predicated region
    $region42: #{tpu_custom_call.1} parent=1 // pred_check
      _
    $region43: #{tpu_custom_call.1} parent=1 // pred_check_branch
      %748 = sbr.rel (0) target = $region45
    $region44: #{tpu_custom_call.1} parent=1 // pred_region
      %749 = dma.done [#allocation4], 256
    $region45: #{tpu_custom_call.1} parent=1 // pred_fallthru
      _
    %750 = vsyncpa [#allocation3], 1
    %751 = vsyncpa [#allocation6], 1
    %752 = vsyncpa [#allocation9], 1
    %753 = vsyncpa [#allocation4], 1

</llo_original>
